<compile_context>
chip_gen: v6e
topology: v6e:2x2x1
jax: 0.10.0
libtpu: 0.0.40
codegen_flags: <defaults>
</compile_context>

<pallas_src>
import jax
import jax.numpy as jnp
from jax.experimental import pallas as pl
from jax.experimental.pallas import tpu as pltpu


_LANE_CANDIDATES = (1024, 512, 256, 128)


def _swish_kernel(x_ref, o_ref):
    # Upcast to f32: matches torch SiLU numerics for half dtypes; sigmoid
    # lowers to the tanh/exp EUP path, keeping the 4 VALU slots clear so the
    # kernel stays on the HBM roofline on all generations.
    x = x_ref[...].astype(jnp.float32)
    o_ref[...] = (x * jax.nn.sigmoid(x)).astype(o_ref.dtype)


def _round_up(a, b):
    return (a + b - 1) // b * b


def _device_kind():
    try:
        return jax.devices()[0].device_kind.lower()
    except Exception:
        return ""


def _swish_flat_128(flat, *, target_block_bytes=None, donate=False):
    """Swish on a 1-D array whose length is a multiple of 128 (no padding)."""
    n = flat.shape[0]
    dtype = flat.dtype
    itemsize = jnp.dtype(dtype).itemsize
    # Dtype-native sublane multiple: 8 (f32), 16 (bf16/f16), 32 (8-bit).
    sub = max(8, 32 // itemsize)

    # Largest lane width (multiple of 128) that divides n exactly.
    lane = next(l for l in _LANE_CANDIDATES if n % l == 0)
    rows = n // lane

    is_v7 = "v7" in _device_kind()
    if target_block_bytes is None:
        # v7x: bigger blocks to amortize per-step overhead at ~3.2 TB/s.
        # v5e/v6e: 2 MiB already keeps overhead <10% and VMEM pressure low.
        target_block_bytes = (8 if is_v7 else 2) * 1024 * 1024

    if rows <= sub:
        rpb = rows  # single block == full array dims (always a legal block)
    else:
        rpb = max(sub, (target_block_bytes // (lane * itemsize)) // sub * sub)
        # Keep >= 4 grid steps: DMA/compute overlap + 2 blocks per v7x core.
        rpb = min(rpb, max(sub, _round_up(pl.cdiv(rows, 4), sub)))
        if is_v7:
            steps = pl.cdiv(rows, rpb)
            if steps > 1 and steps % 2 == 1:
                # Best effort: even step count so neither TensorCore idles on
                # the last wavefront.
                alt = max(sub, _round_up(pl.cdiv(rows, steps + 1), sub))
                if pl.cdiv(rows, alt) % 2 == 0:
                    rpb = alt

    grid = (pl.cdiv(rows, rpb),)
    block = (rpb, lane)
    block_bytes = rpb * lane * itemsize
    # 2 arrays x 2 pipeline buffers x block + compiler scratch headroom.
    vmem_limit = int(min(48 * 1024 * 1024, max(16 * 1024 * 1024, 6 * block_bytes)))

    x2d = flat.reshape(rows, lane)
    extra = {"input_output_aliases": {0: 0}} if donate else {}

    def run(axis_semantics):
        return pl.pallas_call(
            _swish_kernel,
            out_shape=jax.ShapeDtypeStruct((rows, lane), dtype),
            grid_spec=pltpu.PrefetchScalarGridSpec(
                num_scalar_prefetch=0,
                grid=grid,
                in_specs=[pl.BlockSpec(block, lambda i: (i, 0))],
                out_specs=pl.BlockSpec(block, lambda i: (i, 0)),
            ),
            compiler_params=pltpu.CompilerParams(
                dimension_semantics=(axis_semantics,),
                vmem_limit_bytes=vmem_limit,
            ),
            **extra,
        )(x2d)

    if is_v7:
        try:
            # CORE_PARALLEL is what actually shards the grid across both v7x
            # TensorCores; fall back to plain "parallel" if lowering rejects.
            out2d = run(pltpu.CORE_PARALLEL)
        except Exception:
            out2d = run("parallel")
    else:
        out2d = run("parallel")
    return out2d.reshape(-1)


def swish(x, *, target_block_bytes=None, donate=False):
    """Elementwise swish/SiLU, matching torch `x * torch.sigmoid(x)`."""
    if not jnp.issubdtype(x.dtype, jnp.floating):
        raise TypeError(f"swish is defined for floating dtypes only, got {x.dtype}")

    orig_shape = x.shape
    n = x.size
    if n == 0:
        return x
    flat = x.reshape(-1)

    if n < 128:
        # Smaller than one vreg lane row: plain jnp, a kernel gains nothing.
        xf = flat.astype(jnp.float32)
        return (xf * jax.nn.sigmoid(xf)).astype(x.dtype).reshape(orig_shape)

    rem = n % 128
    if rem == 0:
        out = _swish_flat_128(
            flat, target_block_bytes=target_block_bytes, donate=donate
        )
    else:
        # Ragged tail (< 128 elems): kernel on the aligned prefix, plain jnp
        # on the tail -- avoids padding + re-slicing the whole tensor.
        main = _swish_flat_128(
            flat[: n - rem], target_block_bytes=target_block_bytes, donate=False
        )
        tail = flat[n - rem :].astype(jnp.float32)
        tail = (tail * jax.nn.sigmoid(tail)).astype(x.dtype)
        out = jnp.concatenate([main, tail])
    return out.reshape(orig_shape)


if __name__ == "__main__":
    key = jax.random.PRNGKey(0)

    # Shape consistent with an FBCNet-style NCHW activation tensor.
    x = jax.random.normal(key, (2, 4, 16, 16), dtype=jnp.float32)
    y = jax.block_until_ready(swish(x))
    y_ref = x * jax.nn.sigmoid(x)
    assert y.shape == x.shape and y.dtype == x.dtype
    assert jnp.allclose(y, y_ref, atol=1e-6), "f32 mismatch vs reference"

    # bf16 path (f32-internal compute, cast on store).
    xb = x.astype(jnp.bfloat16)
    yb = jax.block_until_ready(swish(xb))
    xb_f = xb.astype(jnp.float32)
    yb_ref = (xb_f * jax.nn.sigmoid(xb_f)).astype(jnp.bfloat16)
    assert yb.dtype == jnp.bfloat16
    assert jnp.allclose(
        yb.astype(jnp.float32), yb_ref.astype(jnp.float32), atol=1e-2
    ), "bf16 mismatch vs reference"

    # Ragged size (n % 128 != 0): kernel prefix + jnp tail path.
    xr = jax.random.normal(key, (5, 101), dtype=jnp.float32)
    yr = jax.block_until_ready(swish(xr))
    yr_ref = xr * jax.nn.sigmoid(xr)
    assert yr.shape == xr.shape
    assert jnp.allclose(yr, yr_ref, atol=1e-6), "ragged mismatch vs reference"

    print("KERNEL_OK")
</pallas_src>

<mosaic_0001>
module attributes {stable_mosaic.version = 11 : i64} {
  func.func @_swish_kernel(%arg0: i32, %arg1: memref<2x1024xf32, #tpu.memory_space<vmem>>, %arg2: memref<2x1024xf32, #tpu.memory_space<vmem>>) attributes {dimension_semantics = [#tpu.dimension_semantics<parallel>], iteration_bounds = array<i64: 1>, scalar_prefetch = 0 : i64, scratch_operands = 0 : i64, tpu.core_type = #tpu.core_type<tc>, window_params = [{transform_indices = @transform_0, window_bounds = array<i64: 2, 1024>}, {transform_indices = @transform_1, window_bounds = array<i64: 2, 1024>}]} {
    %c0 = arith.constant 0 : index
    %c0_0 = arith.constant 0 : index
    %0 = vector.load %arg1[%c0, %c0_0] : memref<2x1024xf32, #tpu.memory_space<vmem>>, vector<2x1024xf32>
    %1 = arith.negf %0 : vector<2x1024xf32>
    %2 = math.exp %1 : vector<2x1024xf32>
    %cst = arith.constant 1.000000e+00 : f32
    %3 = vector.broadcast %cst : f32 to vector<2x1024xf32>
    %4 = arith.addf %3, %2 : vector<2x1024xf32>
    %5 = arith.divf %3, %4 : vector<2x1024xf32>
    %6 = arith.mulf %0, %5 : vector<2x1024xf32>
    %c0_1 = arith.constant 0 : index
    %c0_2 = arith.constant 0 : index
    %7 = vector.load %arg2[%c0_1, %c0_2] : memref<2x1024xf32, #tpu.memory_space<vmem>>, vector<2x1024xf32>
    tpu.vector_store %arg2[%c0_1, %c0_2], %6 {strides = array<i32>} : memref<2x1024xf32, #tpu.memory_space<vmem>>, vector<2x1024xf32>,
    return
  }
  func.func @transform_0(%arg0: i32) -> (i32, i32) {
    %c0_i32 = arith.constant 0 : i32
    %c0_i32_0 = arith.constant 0 : i32
    return %arg0, %c0_i32 : i32, i32
  }
  func.func @transform_1(%arg0: i32) -> (i32, i32) {
    %c0_i32 = arith.constant 0 : i32
    %c0_i32_0 = arith.constant 0 : i32
    return %arg0, %c0_i32 : i32, i32
  }
}

</mosaic_0001>

<llo_original>
// kernel: tpu_custom_call.1
$region0: #{tpu_custom_call.1}
  #allocation0 [shape = 'u32[]', space=smem, size = 0x4, offset = 0x4, fixed_abs, tag = 'smem constant byte address 0x4 - core index']
  #allocation1 [shape = 'u32[144,128]{1,0:T(1,128)}', space=vmem, size = 0x12000, scoped, tag = 'internal scratch']
  %s0 = inlined_call_operand.hbm [shape: f32[2,1024], index: 0, kind: input, shape index: {}]
  %s1 = inlined_call_operand.hbm [shape: f32[2,1024], index: 1, kind: output, shape index: {}]
  %s2 = sld [smem:[#allocation0]]
  $region18: #{tpu_custom_call.1} parent=0
    _
  %s4 = ssub.s32 1, %s2
  %s5 = scalar_select 0, %s4, %s2
  $region1: #{tpu_custom_call.1} parent=0
    #allocation2 [shape = 'u8[8192]{0}', space=vmem, size = 0x2000, scoped, tag = 'input window, operand 0, single buffered']
    #allocation3 [shape = 's32[1]{0}', space=sflag, size = 0x4, scoped, tag = 'scoped memory for tpu_custom_call.1']
    #allocation4 [shape = 's32[1]{0}', space=sflag, size = 0x4, scoped, tag = 'scoped memory for tpu_custom_call.1']
    #allocation5 [shape = 'u8[8192]{0}', space=vmem, size = 0x2000, scoped, tag = 'output window, operand 0, single buffered']
    %6 = vsyncpa [#allocation3], 0
    %7 = vsyncpa [#allocation4], 0
    // Predicated region
    $region2: #{tpu_custom_call.1} parent=1 // pred_check
      _
    $region3: #{tpu_custom_call.1} parent=1 // pred_check_branch
      %9 = sbr.rel (0) target = $region5
    $region4: #{tpu_custom_call.1} parent=1 // pred_region
      %s11 = ssub.s32 256, 256
      %12 = vsyncadd [#allocation3], %s11
      %s14 = sshll.u32 [#allocation2], 4
      %s15 = int_to_ptr.vmem [resolvable:$true] %s14
      %17 = dma.hbm_to_vmem [thread:$0]  %s0, 256, %s15, [#allocation3]
    $region5: #{tpu_custom_call.1} parent=1 // pred_fallthru
      _
    // Predicated region
    $region6: #{tpu_custom_call.1} parent=1 // pred_check
      _
    $region7: #{tpu_custom_call.1} parent=1 // pred_check_branch
      %19 = sbr.rel (0) target = $region9
    $region8: #{tpu_custom_call.1} parent=1 // pred_region
      %20 = dma.done [#allocation3], 256
    $region9: #{tpu_custom_call.1} parent=1 // pred_fallthru
      _
    %v21 = vld [vmem:[#allocation2] sm:$0xff]
    %v22 = vld [vmem:[#allocation2 + $0x8] sm:$0xff]
    %v23 = vxor.u32 %v21, 2147483648
    %v24 = vxor.u32 %v22, 2147483648
    %v25 = vmul.f32 %v23, 1.442695
    %v26 = vpow.pop %v25
    %v27 = vmul.f32 %v24, 1.442695
    %v28 = vpow.pop %v27
    %v29 = vadd.f32 %v26, 1.0
    %v30 = vadd.f32 %v28, 1.0
    %v31 = vrcp.pop %v29
    %v32 = vmul.f32 1.0, %v31
    %v33 = vrcp.pop %v30
    %v34 = vmul.f32 1.0, %v33
    %v35 = vmul.f32 %v21, %v32
    %v36 = vmul.f32 %v22, %v34
    %37 = vst [vmem:[#allocation5] sm:$0xff] %v35
    %38 = vst [vmem:[#allocation5 + $0x8] sm:$0xff] %v36
    // Predicated region
    $region10: #{tpu_custom_call.1} parent=1 // pred_check
      _
    $region11: #{tpu_custom_call.1} parent=1 // pred_check_branch
      %40 = sbr.rel (0) target = $region13
    $region12: #{tpu_custom_call.1} parent=1 // pred_region
      %s42 = ssub.s32 256, 256
      %43 = vsyncadd [#allocation4], %s42
      %s45 = sshll.u32 [#allocation5], 4
      %s46 = int_to_ptr.vmem [resolvable:$true] %s45
      %48 = dma.vmem_to_hbm [thread:$0]  %s46, 256, %s1, [#allocation4]
    $region13: #{tpu_custom_call.1} parent=1 // pred_fallthru
      _
    // Predicated region
    $region14: #{tpu_custom_call.1} parent=1 // pred_check
      _
    $region15: #{tpu_custom_call.1} parent=1 // pred_check_branch
      %50 = sbr.rel (0) target = $region17
    $region16: #{tpu_custom_call.1} parent=1 // pred_region
      %51 = dma.done [#allocation4], 256
    $region17: #{tpu_custom_call.1} parent=1 // pred_fallthru
      _
    %52 = vsyncpa [#allocation3], 1
    %53 = vsyncpa [#allocation4], 1

</llo_original>
